<compile_context>
chip_gen: v6e
topology: v6e:2x2x1
jax: 0.10.0
libtpu: 0.0.40
codegen_flags: <defaults>
</compile_context>

<pallas_src>
import functools

import jax
import jax.numpy as jnp
from jax.experimental import pallas as pl
from jax.experimental.pallas import tpu as pltpu

_NEG = -1e30  # finite "-inf": exp underflows to 0, no NaN from inf - inf


def _bpr_max_kernel(logit_ref, diag_ref, out_ref, *, tm, n_valid_rows, has_row_pad):
    x = logit_ref[...].astype(jnp.float32)            # (TM, Bp)
    diag = diag_ref[...].astype(jnp.float32)          # (TM, 1)

    row_max = jnp.max(x, axis=1, keepdims=True)       # (TM, 1)   XLU
    e = jnp.exp(x - row_max)                          # (TM, Bp)  EUP (single full-tile pass)
    row_sum = jnp.sum(e, axis=1, keepdims=True)       # (TM, 1)   XLU, >= 1 on real rows

    # sigmoid(diag - x) = 1 / (1 + exp(x - diag)) = 1 / (1 + e * c),
    # c = exp(rowmax - diag) on TM elements only.  diag <= rowmax for real rows;
    # the clamp keeps e*c finite in degenerate rows whose true contribution is
    # below f32 resolution anyway.
    c = jnp.exp(jnp.minimum(row_max - diag, 80.0))    # (TM, 1)   EUP, TM elems
    contrib = e / (1.0 + e * c)                       # (TM, Bp)  == e * sigmoid(diag - x)
    t = jnp.sum(contrib, axis=1, keepdims=True)       # (TM, 1)   XLU

    per_row = t / row_sum                             # (TM, 1)   exact divide, TM elems
    if has_row_pad:
        row_ids = (jax.lax.broadcasted_iota(jnp.int32, (tm, 1), 0)
                   + pl.program_id(0) * tm)
        per_row = jnp.where(row_ids < n_valid_rows, per_row, 0.0)
    partial = jnp.sum(per_row)

    # Lane-dense per-tile partial sum -> row axis stays "parallel" (megacore).
    out_ref[...] = jnp.full((1, 8, 128), partial, dtype=jnp.float32)


def _vmem_capacity_bytes():
    try:
        info = pltpu.get_tpu_info()
        cap = getattr(info, "vmem_capacity_bytes", None)
        if cap:
            return int(cap)
    except Exception:
        pass
    return 64 * 1024 * 1024  # conservative: v7x per-TensorCore VMEM


def _pick_tiling(b, itemsize, vmem_cap, max_tm=None):
    """Return (tm, b_pad): tm divides b_pad, tm sublane-aligned, tile fits budget.

    Budget is generation-aware: 4 MiB input tiles on 64 MiB-VMEM parts (v7x),
    8 MiB on 128 MiB parts (v5e/v6e).  Prefers grid >= 2 so the 'parallel' row
    axis can shard across two TensorCores.
    """
    budget = (4 << 20) if vmem_cap <= (64 << 20) else (8 << 20)
    align = 8 if itemsize >= 4 else 16                # f32 / bf16 sublane alignment
    row_cap = -(-b // align) * align                  # don't tile taller than the matrix

    feasible = []
    for tm in (1024, 512, 256, 128, 64, 32, 16, 8):
        if tm % align or tm > row_cap:
            continue
        if max_tm is not None and tm > max_tm:
            continue
        b_pad = -(-b // tm) * tm
        if tm * b_pad * itemsize > budget:
            continue
        feasible.append((tm, b_pad))
    if not feasible:
        # TODO(synk): extreme B would also need column tiling; not required here.
        tm = align
        return tm, -(-b // tm) * tm
    for tm, b_pad in feasible:                        # descending tm
        if b_pad // tm >= 2:
            return tm, b_pad
    return feasible[0]


def bpr_max_loss(logit, max_tm=None):
    b, b2 = logit.shape
    assert b == b2, "BPR_max expects a square (B, B) logit matrix"

    itemsize = jnp.dtype(logit.dtype).itemsize
    vmem_cap = _vmem_capacity_bytes()
    tm, b_pad = _pick_tiling(b, itemsize, vmem_cap, max_tm)
    grid = b_pad // tm

    # Diagonal extracted once on the wrapper side (B elems of layout plumbing),
    # so the kernel does zero per-element diag work.
    diag = jnp.diagonal(logit).reshape(b, 1)
    if b_pad != b:
        pad = b_pad - b
        logit = jnp.pad(logit, ((0, pad), (0, pad)), constant_values=_NEG)
        diag = jnp.pad(diag, ((0, pad), (0, 0)))

    # Explicit scoped-VMEM limit: 2x input tile (double buffer) + ~4x f32 tile
    # for materialized temporaries (e, contrib, casts) + headroom.
    tile_in = tm * b_pad * itemsize
    tile_f32 = tm * b_pad * 4
    desired = 2 * tile_in + 4 * tile_f32 + (4 << 20)
    vmem_limit = int(max(32 << 20, min(desired, (vmem_cap * 3) // 4)))

    kernel = functools.partial(
        _bpr_max_kernel, tm=tm, n_valid_rows=b, has_row_pad=(b_pad != b))

    cost = pl.CostEstimate(
        flops=10 * b_pad * b_pad,
        transcendentals=2 * b_pad * b_pad,
        bytes_accessed=b_pad * b_pad * itemsize + b_pad * 4 + grid * 8 * 128 * 4,
    )

    partials = pl.pallas_call(
        kernel,
        out_shape=jax.ShapeDtypeStruct((grid, 8, 128), jnp.float32),
        grid=(grid,),
        in_specs=[
            pl.BlockSpec((tm, b_pad), lambda i: (i, 0)),
            pl.BlockSpec((tm, 1), lambda i: (i, 0)),
        ],
        out_specs=pl.BlockSpec((1, 8, 128), lambda i: (i, 0, 0)),
        compiler_params=pltpu.CompilerParams(
            dimension_semantics=("parallel",),
            vmem_limit_bytes=vmem_limit,
        ),
        cost_estimate=cost,
    )(logit, diag)

    # Tiny finalize in JAX: -log(mean) = log(B*B) - log(sum of all partials).
    # Padded rows/cols contribute exactly 0 to the sum; mean divides by true B*B.
    total = jnp.sum(partials[:, 0, 0])
    return jnp.log(jnp.float32(b) * jnp.float32(b)) - jnp.log(total)


def bpr_max_ref(logit):
    """Pure-JAX reference mirroring the PyTorch module."""
    x = logit.astype(jnp.float32)
    sm = jax.nn.softmax(x, axis=1)
    diff = jnp.diag(x)[:, None] - x
    return -jnp.log(jnp.mean(sm * jax.nn.sigmoid(diff)))


if __name__ == "__main__":
    key = jax.random.PRNGKey(0)
    k1, k2, k3 = jax.random.split(key, 3)

    # Small square logit matrix (rows = batch samples, cols = sampled-item scores).
    b1 = 16
    logit1 = jax.random.normal(k1, (b1, b1), dtype=jnp.float32)
    loss1 = jax.block_until_ready(bpr_max_loss(logit1))
    ref1 = bpr_max_ref(logit1)
    assert jnp.allclose(loss1, ref1, rtol=1e-5, atol=1e-5), (loss1, ref1)

    # Forced small row tile -> multi-step grid / per-tile partial-sum path.
    b2 = 64
    logit2 = jax.random.normal(k2, (b2, b2), dtype=jnp.float32)
    loss2 = jax.block_until_ready(bpr_max_loss(logit2, max_tm=8))
    ref2 = bpr_max_ref(logit2)
    assert jnp.allclose(loss2, ref2, rtol=1e-5, atol=1e-5), (loss2, ref2)

    # Non-divisible B exercises the pad-columns / mask-padded-rows path.
    b3 = 20
    logit3 = jax.random.normal(k3, (b3, b3), dtype=jnp.float32)
    loss3 = jax.block_until_ready(bpr_max_loss(logit3, max_tm=8))
    ref3 = bpr_max_ref(logit3)
    assert jnp.allclose(loss3, ref3, rtol=1e-5, atol=1e-5), (loss3, ref3)

    print("KERNEL_OK")
</pallas_src>

<mosaic_0001>
module attributes {stable_mosaic.version = 11 : i64} {
  func.func @_bpr_max_kernel(%arg0: i32, %arg1: memref<8x16xf32, #tpu.memory_space<vmem>>, %arg2: memref<8x1xf32, #tpu.memory_space<vmem>>, %arg3: memref<1x8x128xf32, #tpu.memory_space<vmem>>) attributes {dimension_semantics = [#tpu.dimension_semantics<parallel>], iteration_bounds = array<i64: 2>, scalar_prefetch = 0 : i64, scratch_operands = 0 : i64, tpu.core_type = #tpu.core_type<tc>, window_params = [{transform_indices = @transform_0, window_bounds = array<i64: 8, 16>}, {transform_indices = @transform_1, window_bounds = array<i64: 8, 1>}, {transform_indices = @transform_2, window_bounds = array<i64: 1, 8, 128>}]} {
    %c0 = arith.constant 0 : index
    %c0_0 = arith.constant 0 : index
    %0 = vector.load %arg1[%c0, %c0_0] : memref<8x16xf32, #tpu.memory_space<vmem>>, vector<8x16xf32>
    %c0_1 = arith.constant 0 : index
    %c0_2 = arith.constant 0 : index
    %1 = vector.load %arg2[%c0_1, %c0_2] : memref<8x1xf32, #tpu.memory_space<vmem>>, vector<8x1xf32>
    %cst = arith.constant dense<0xFF800000> : vector<8xf32>
    %2 = vector.multi_reduction <maximumf>, %0, %cst [1] : vector<8x16xf32> to vector<8xf32>
    %3 = vector.shape_cast %2 : vector<8xf32> to vector<8x1xf32>
    %4 = vector.broadcast %3 : vector<8x1xf32> to vector<8x16xf32>
    %5 = arith.subf %0, %4 : vector<8x16xf32>
    %6 = math.exp %5 : vector<8x16xf32>
    %cst_3 = arith.constant dense<0.000000e+00> : vector<8xf32>
    %7 = vector.multi_reduction <add>, %6, %cst_3 [1] : vector<8x16xf32> to vector<8xf32>
    %8 = vector.shape_cast %7 : vector<8xf32> to vector<8x1xf32>
    %9 = arith.subf %3, %1 : vector<8x1xf32>
    %cst_4 = arith.constant 8.000000e+01 : f32
    %10 = vector.broadcast %cst_4 : f32 to vector<8x1xf32>
    %11 = arith.minimumf %9, %10 : vector<8x1xf32>
    %12 = math.exp %11 : vector<8x1xf32>
    %13 = vector.broadcast %12 : vector<8x1xf32> to vector<8x16xf32>
    %14 = arith.mulf %6, %13 : vector<8x16xf32>
    %cst_5 = arith.constant 1.000000e+00 : f32
    %15 = vector.broadcast %cst_5 : f32 to vector<8x16xf32>
    %16 = arith.addf %15, %14 : vector<8x16xf32>
    %17 = arith.divf %6, %16 : vector<8x16xf32>
    %cst_6 = arith.constant dense<0.000000e+00> : vector<8xf32>
    %18 = vector.multi_reduction <add>, %17, %cst_6 [1] : vector<8x16xf32> to vector<8xf32>
    %19 = vector.shape_cast %18 : vector<8xf32> to vector<8x1xf32>
    %20 = arith.divf %19, %8 : vector<8x1xf32>
    %21 = vector.shape_cast %20 : vector<8x1xf32> to vector<1x8x1xf32>
    %cst_7 = arith.constant dense<0.000000e+00> : vector<1xf32>
    %22 = vector.multi_reduction <add>, %21, %cst_7 [1, 2] : vector<1x8x1xf32> to vector<1xf32>
    %23 = vector.shape_cast %22 : vector<1xf32> to vector<1x1x1xf32>
    %24 = vector.extract %23[0, 0, 0] : f32 from vector<1x1x1xf32>
    %25 = vector.broadcast %24 : f32 to vector<1x8x128xf32>
    %c0_8 = arith.constant 0 : index
    %c0_9 = arith.constant 0 : index
    %c0_10 = arith.constant 0 : index
    %26 = vector.load %arg3[%c0_8, %c0_9, %c0_10] : memref<1x8x128xf32, #tpu.memory_space<vmem>>, vector<1x8x128xf32>
    tpu.vector_store %arg3[%c0_8, %c0_9, %c0_10], %25 {strides = array<i32>} : memref<1x8x128xf32, #tpu.memory_space<vmem>>, vector<1x8x128xf32>,
    return
  }
  func.func @transform_0(%arg0: i32) -> (i32, i32) {
    %c0_i32 = arith.constant 0 : i32
    %c0_i32_0 = arith.constant 0 : i32
    return %arg0, %c0_i32 : i32, i32
  }
  func.func @transform_1(%arg0: i32) -> (i32, i32) {
    %c0_i32 = arith.constant 0 : i32
    %c0_i32_0 = arith.constant 0 : i32
    return %arg0, %c0_i32 : i32, i32
  }
  func.func @transform_2(%arg0: i32) -> (i32, i32, i32) {
    %c0_i32 = arith.constant 0 : i32
    %c0_i32_0 = arith.constant 0 : i32
    %c0_i32_1 = arith.constant 0 : i32
    return %arg0, %c0_i32, %c0_i32_0 : i32, i32, i32
  }
}

</mosaic_0001>

<llo_original>
// kernel: tpu_custom_call.1
$region0: #{tpu_custom_call.1}
  #allocation0 [shape = 'u32[]', space=smem, size = 0x4, offset = 0x4, fixed_abs, tag = 'smem constant byte address 0x4 - core index']
  #allocation1 [shape = 'u32[144,128]{1,0:T(1,128)}', space=vmem, size = 0x12000, scoped, tag = 'internal scratch']
  %s0 = inlined_call_operand.vmem [shape: f32[16,16], index: 0, kind: input, shape index: {}]
  %s1 = inlined_call_operand.vmem [shape: f32[16,1], index: 1, kind: input, shape index: {}]
  %s2 = inlined_call_operand.hbm [shape: f32[2,8,128], index: 2, kind: output, shape index: {}]
  %s3 = sld [smem:[#allocation0]]
  $region41: #{tpu_custom_call.1} parent=0
    _
  %s5 = ssub.s32 1, %s3
  %s6 = scalar_select 0, %s5, %s3
  $region1: #{tpu_custom_call.1} parent=0
    #allocation2 [shape = 'u8[8192]{0}', space=vmem, size = 0x2000, scoped, tag = 'output window, operand 0']
    #allocation3 [shape = 's32[2]{0}', space=sflag, size = 0x8, scoped, tag = 'scoped memory for tpu_custom_call.1']
    %7 = vsyncpa [#allocation3], 0
    %s8 = scalar_lea.sflag [#allocation3], 1
    %9 = vsyncpa %s8, 0
    loop: start=0, step=1, limit=4
    $region2: #{tpu_custom_call.1} parent=1 // loop_pre_header
      _
    $region3: #{tpu_custom_call.1} parent=1 // loop_header
      %s11 = sphi 0, %s15
      %p12 = scmp.ge.s32.totalorder %s11, 4
      %s21 = sphi 0, %s23
      %s24 = sphi 0, %s21
      %s25 = sphi 0, %s24
      %s41 = sphi 0, %s25
      %s47 = sphi 0, %s49
      %s50 = sphi 0, %s47
      %s51 = sphi 0, %s50
      %s67 = sphi 0, %s51
      %s73 = sphi 0, %s75
      %s76 = sphi 0, %s73
      %s77 = sphi 0, %s76
      %s93 = sphi 0, %s77
    $region4: #{tpu_custom_call.1} parent=1 // loop_header_branch
      %14 = sbr.rel (%p12) target = $region8
    $region5: #{tpu_custom_call.1} parent=1 // loop_body
      %s16 = ssub.s32 %s11, 1
      %s17 = ssub.s32 %s11, 2
      %s18 = sadd.s32 %s11, 1
      %s19 = ssub.s32 %s11, %s18
      %p20 = scmp.eq.s32.totalorder %s19, 0
      %s22 = sadd.s32 %s21, 1
      %s23 = scalar_select %p20, %s21, %s22
      %p26 = pneg %p20
      %p27 = scmp.eq.s32.totalorder %s11, 1
      %p28 = por %p26, %p27
      %p29 = scmp.ne.s32.totalorder %s21, %s24
      %p30 = scmp.eq.s32.totalorder %s11, 0
      %p31 = por %p29, %p30
      %p32 = scmp.ne.s32.totalorder %s21, %s24
      %p33 = scmp.eq.s32.totalorder %s16, 1
      %p34 = por %p32, %p33
      %p35 = scmp.ne.s32.totalorder %s24, %s25
      %p36 = scmp.eq.s32.totalorder %s16, 0
      %p37 = por %p35, %p36
      %p38 = scmp.ne.s32.totalorder %s24, %s25
      %p39 = scmp.eq.s32.totalorder %s17, 1
      %p40 = por %p38, %p39
      %p42 = scmp.ne.s32.totalorder %s25, %s41
      %p43 = scmp.eq.s32.totalorder %s17, 0
      %p44 = por %p42, %p43
      %s45 = ssub.s32 %s11, %s18
      %p46 = scmp.eq.s32.totalorder %s45, 0
      %s48 = sadd.s32 %s47, 1
      %s49 = scalar_select %p46, %s47, %s48
      %p52 = pneg %p46
      %p53 = scmp.eq.s32.totalorder %s11, 1
      %p54 = por %p52, %p53
      %p55 = scmp.ne.s32.totalorder %s47, %s50
      %p56 = scmp.eq.s32.totalorder %s11, 0
      %p57 = por %p55, %p56
      %p58 = scmp.ne.s32.totalorder %s47, %s50
      %p59 = scmp.eq.s32.totalorder %s16, 1
      %p60 = por %p58, %p59
      %p61 = scmp.ne.s32.totalorder %s50, %s51
      %p62 = scmp.eq.s32.totalorder %s16, 0
      %p63 = por %p61, %p62
      %p64 = scmp.ne.s32.totalorder %s50, %s51
      %p65 = scmp.eq.s32.totalorder %s17, 1
      %p66 = por %p64, %p65
      %p68 = scmp.ne.s32.totalorder %s51, %s67
      %p69 = scmp.eq.s32.totalorder %s17, 0
      %p70 = por %p68, %p69
      %s71 = ssub.s32 %s11, %s18
      %p72 = scmp.eq.s32.totalorder %s71, 0
      %s74 = sadd.s32 %s73, 1
      %s75 = scalar_select %p72, %s73, %s74
      %p78 = pneg %p72
      %p79 = scmp.eq.s32.totalorder %s11, 1
      %p80 = por %p78, %p79
      %p81 = scmp.ne.s32.totalorder %s73, %s76
      %p82 = scmp.eq.s32.totalorder %s11, 0
      %p83 = por %p81, %p82
      %p84 = scmp.ne.s32.totalorder %s73, %s76
      %p85 = scmp.eq.s32.totalorder %s16, 1
      %p86 = por %p84, %p85
      %p87 = scmp.ne.s32.totalorder %s76, %s77
      %p88 = scmp.eq.s32.totalorder %s16, 0
      %p89 = por %p87, %p88
      %p90 = scmp.ne.s32.totalorder %s76, %s77
      %p91 = scmp.eq.s32.totalorder %s17, 1
      %p92 = por %p90, %p91
      %p94 = scmp.ne.s32.totalorder %s77, %s93
      %p95 = scmp.eq.s32.totalorder %s17, 0
      %p96 = por %p94, %p95
      %p97 = scmp.le.s32.totalorder 1, %s11
      %p98 = scmp.lt.s32.totalorder %s11, 3
      %p99 = pnand %p97, %p98
      %p100 = pneg %p99
      // Predicated region
      $region9: #{tpu_custom_call.1} parent=5 // pred_check
        _
      $region10: #{tpu_custom_call.1} parent=5 // pred_check_branch
        %102 = sbr.rel (%p99) target = $region12
      $region11: #{tpu_custom_call.1} parent=5 // pred_region
        %s103 = ssub.s32 %s11, 1
      $region12: #{tpu_custom_call.1} parent=5 // pred_fallthru
        _
      %p104 = scmp.lt.s32.totalorder %s11, 2
      // Predicated region
      $region13: #{tpu_custom_call.1} parent=5 // pred_check
        %p105 = pneg %p104
      $region14: #{tpu_custom_call.1} parent=5 // pred_check_branch
        %107 = sbr.rel (%p105) target = $region16
      $region15: #{tpu_custom_call.1} parent=5 // pred_region
        // Predicated region
        $region17: #{tpu_custom_call.1} parent=15 // pred_check
          %p108 = pneg %p31
        $region18: #{tpu_custom_call.1} parent=15 // pred_check_branch
          %110 = sbr.rel (%p108) target = $region20
        $region19: #{tpu_custom_call.1} parent=15 // pred_region
          %p111 = scmp.lt.s32.totalorder %s11, 1
          %s112 = scalar_select %p111, %s11, 1
          %s113 = smul.addr %s112, 8
          %s114 = scalar_lea.vmem %s0, %s113
        $region20: #{tpu_custom_call.1} parent=15 // pred_fallthru
          _
        // Predicated region
        $region21: #{tpu_custom_call.1} parent=15 // pred_check
          %p115 = pneg %p57
        $region22: #{tpu_custom_call.1} parent=15 // pred_check_branch
          %117 = sbr.rel (%p115) target = $region24
        $region23: #{tpu_custom_call.1} parent=15 // pred_region
          %p118 = scmp.lt.s32.totalorder %s11, 1
          %s119 = scalar_select %p118, %s11, 1
          %s120 = smul.addr %s119, 8
          %s121 = scalar_lea.vmem %s1, %s120
        $region24: #{tpu_custom_call.1} parent=15 // pred_fallthru
          _
      $region16: #{tpu_custom_call.1} parent=5 // pred_fallthru
        _
      %p122 = scmp.le.s32.totalorder 1, %s11
      %p123 = scmp.lt.s32.totalorder %s11, 3
      %p124 = pnand %p122, %p123
      %p125 = pneg %p124
      // Predicated region
      $region25: #{tpu_custom_call.1} parent=5 // pred_check
        _
      $region26: #{tpu_custom_call.1} parent=5 // pred_check_branch
        %127 = sbr.rel (%p124) target = $region28
      $region27: #{tpu_custom_call.1} parent=5 // pred_region
        %s128 = ssub.s32 %s11, 1
        %p129 = scmp.lt.s32.totalorder %s16, 1
        %s130 = scalar_select %p129, %s16, 1
        %s131 = smul.addr %s130, 8
        %s132 = scalar_lea.vmem %s0, %s131
        %p133 = pneg %p37
        %p134 = pneg %p34
        %p135 = scmp.lt.s32.totalorder %s16, 1
        %s136 = scalar_select %p135, %s16, 1
        %s137 = smul.addr %s136, 8
        %s138 = scalar_lea.vmem %s1, %s137
        %p139 = pneg %p63
        %p140 = pneg %p60
        %p141 = pneg %p89
        %p142 = pneg %p86
        %s143 = sand.u32 %s76, 1
        %s144 = scalar_lea.sflag [#allocation3], %s143
        %s145 = sand.u32 %s76, 1
        %s146 = smul.addr %s145, 8
        %s147 = scalar_lea.vmem [#allocation2], %s146
        %p148 = scmp.lt.s32.totalorder %s16, 1
        %s149 = scalar_select %p148, %s16, 1
        %s150 = smul.addr %s149, 8
        %s151 = scalar_lea.vmem %s0, %s150
        %p152 = scmp.lt.s32.totalorder %s16, 1
        %s153 = scalar_select %p152, %s16, 1
        %s154 = smul.addr %s153, 8
        %s155 = scalar_lea.vmem %s1, %s154
        %v156 = vld [vmem:[%s151] sm:$0xff]
        %v157 = vld [vmem:[%s155] sm:$0xff]
        %vm158 = vcmask 130048
        %v159 = vsel %vm158, %v156, -inf
        %160 = vmax.xlane.f32.xlu0 %v159
        %v161 = vpop.xlane.xlu0 %160
        %v162 = vsub.f32 %v156, %v161
        %v163 = vmul.f32 %v162, 1.442695
        %v164 = vpow.pop %v163
        %v165 = vsel %vm158, %v164, 0.0
        %166 = vadd.xlane.f32.xlu0 %v165
        %v167 = vpop.xlane.xlu0 %166
        %v168 = vsub.f32 %v161, %v157
        %v169 = vmin.f32 %v168, 80.0
        %v170 = vmul.f32 %v169, 1.442695
        %v171 = vpow.pop %v170
        %173 = vset.pattern.permute.xlu0 0
        %174 = vperm.xlu0 %173, %v171
        %v175 = vpop.permute.xlu0 %174
        %v177 = vmul.f32 %v164, %v175
        %v178 = vadd.f32 %v177, 1.0
        %v179 = vrcp.pop %v178
        %v180 = vmul.f32 %v164, %v179
        %v181 = vsel %vm158, %v180, 0.0
        %182 = vadd.xlane.f32.xlu0 %v181
        %v183 = vpop.xlane.xlu0 %182
        %v184 = vrcp.pop %v167
        %v185 = vmul.f32 %v183, %v184
        %vm186 = vcmask 7168
        %v187 = vsel %vm186, %v185, 0.0
        %188 = vadd.xlane.f32.xlu0 %v187
        %v189 = vpop.xlane.xlu0 %188
        %v190 = vrot.slane %v189, 4
        %v191 = vadd.f32 %v189, %v190
        %v192 = vrot.slane %v191, 2
        %v193 = vadd.f32 %v191, %v192
        %v194 = vrot.slane %v193, 1
        %v195 = vadd.f32 %v193, %v194
        %s196 = vtos %v195
        %v197 = vstv %s196
        %198 = vst [vmem:[%s147] sm:$0xff] %v197
        %s199 = sand.u32 %s76, 1
        %s200 = scalar_lea.sflag [#allocation3], %s199
        %s201 = sand.u32 %s76, 1
        %s202 = smul.addr %s201, 8
        %s203 = scalar_lea.vmem [#allocation2], %s202
        // Predicated region
        $region29: #{tpu_custom_call.1} parent=27 // pred_check
          %p204 = pneg %p86
        $region30: #{tpu_custom_call.1} parent=27 // pred_check_branch
          %206 = sbr.rel (%p204) target = $region32
        $region31: #{tpu_custom_call.1} parent=27 // pred_region
          %s208 = ssub.s32 128, 128
          %209 = vsyncadd %s200, %s208
          %s210 = smul.addr %s16, 128
          %s211 = scalar_lea.hbm %s2, %s210
          %s213 = sshll.u32 %s203, 4
          %s214 = int_to_ptr.vmem [resolvable:$true] %s213
          %216 = dma.vmem_to_hbm [thread:$0]  %s214, 128, %s211, %s200
        $region32: #{tpu_custom_call.1} parent=27 // pred_fallthru
          _
      $region28: #{tpu_custom_call.1} parent=5 // pred_fallthru
        _
      %p217 = scmp.le.s32.totalorder 2, %s11
      // Predicated region
      $region33: #{tpu_custom_call.1} parent=5 // pred_check
        %p218 = pneg %p217
      $region34: #{tpu_custom_call.1} parent=5 // pred_check_branch
        %220 = sbr.rel (%p218) target = $region36
      $region35: #{tpu_custom_call.1} parent=5 // pred_region
        %s221 = ssub.s32 %s11, 2
        // Predicated region
        $region37: #{tpu_custom_call.1} parent=35 // pred_check
          %p222 = pneg %p92
        $region38: #{tpu_custom_call.1} parent=35 // pred_check_branch
          %224 = sbr.rel (%p222) target = $region40
        $region39: #{tpu_custom_call.1} parent=35 // pred_region
          %s225 = sand.u32 %s77, 1
          %s226 = scalar_lea.sflag [#allocation3], %s225
          %s227 = sand.u32 %s77, 1
          %s228 = smul.addr %s227, 8
          %s229 = scalar_lea.vmem [#allocation2], %s228
          %230 = dma.done %s226, 128
        $region40: #{tpu_custom_call.1} parent=35 // pred_fallthru
          _
      $region36: #{tpu_custom_call.1} parent=5 // pred_fallthru
        _
    $region6: #{tpu_custom_call.1} parent=1 // loop_footer
      %s15 = sadd.s32 1, %s11
    $region7: #{tpu_custom_call.1} parent=1 // loop_footer_branch
      %10 = sbr.rel target = $region3
    $region8: #{tpu_custom_call.1} parent=1 // loop_exit
      _
    %231 = vsyncpa [#allocation3], 1
    %s232 = scalar_lea.sflag [#allocation3], 1
    %233 = vsyncpa %s232, 1

</llo_original>
